<compile_context>
chip_gen: v7x
topology: tpu7x:2x2x1
jax: 0.10.0
libtpu: 0.0.40
codegen_flags: <defaults>
</compile_context>

<pallas_src>
import functools

import jax
import jax.numpy as jnp
import numpy as np
from jax import lax
from jax.experimental import pallas as pl
from jax.experimental.pallas import tpu as pltpu

EPS = 1e-5      # PyTorch BatchNorm2d default eps
LANES = 128     # TPU lane width


def _round_up(x, m):
    return (x + m - 1) // m * m


def _pad_last(a, to):
    pad = to - a.shape[-1]
    if pad == 0:
        return a
    cfg = [(0, 0)] * (a.ndim - 1) + [(0, pad)]
    return jnp.pad(a, cfg)


# ---------------------------------------------------------------------------
# Pallas kernel: fused 3x3 conv + folded BN + ReLU (+ fused residual branch)
# ---------------------------------------------------------------------------
def _fused_conv3x3_kernel(*refs, stride, th, shortcut):
    """One grid step == one (image, output-row-tile).

    x_ref : (stride*stride, Hq, Wq, Cin_p)  bf16  phase-split, spatially padded
    w_ref : (9*Cin_p, Cout_p)               bf16  3x3 weights (im2col layout,
                                                  BN scale folded in)
    b_ref : (1, Cout_p)                     f32   folded BN bias
    shortcut == "identity": sc_ref (1, TH, Wo, Cout_p) bf16
    shortcut == "conv":     xs_ref (1, TH, Wo, Cs) bf16, ws_ref (Cs, Cout_p)
                            bf16, bs_ref (1, Cout_p) f32
    o_ref : (1, TH, Wo, Cout_p)   (lane-dense, unmasked stores)
    """
    if shortcut == "conv":
        x_ref, w_ref, b_ref, xs_ref, ws_ref, bs_ref, o_ref = refs
    elif shortcut == "identity":
        x_ref, w_ref, b_ref, sc_ref, o_ref = refs
    else:
        x_ref, w_ref, b_ref, o_ref = refs

    _, _, wo, cout = o_ref.shape
    cin = x_ref.shape[-1]
    row0 = pl.multiple_of(pl.program_id(1) * th, th)   # first output row of tile

    # Build the im2col slab for this row tile: 9 bf16 taps concatenated along
    # the lane dim (each tap is 128-lane aligned) -> one K = 9*Cin_p matmul.
    taps = []
    for dh in range(3):
        for dw in range(3):
            p = (dh % stride) * stride + (dw % stride)   # phase index
            r0, c0 = dh // stride, dw // stride
            taps.append(x_ref[p, pl.ds(row0 + r0, th), c0:c0 + wo, :])
    im2col = jnp.concatenate(taps, axis=-1).reshape(th * wo, 9 * cin)

    acc = jnp.dot(im2col, w_ref[...], preferred_element_type=jnp.float32)

    # Folded-BN affine (scale already in the weights) + inner ReLU — in f32.
    y = jnp.maximum(acc + b_ref[...], 0.0)               # (TH*Wo, Cout_p)

    if shortcut == "identity":
        sc = sc_ref[...].reshape(th * wo, cout).astype(jnp.float32)
        y = jnp.maximum(y + sc, 0.0)
    elif shortcut == "conv":
        cs = xs_ref.shape[-1]
        xs = xs_ref[...].reshape(th * wo, cs)            # bf16 MXU feed
        sc = jnp.dot(xs, ws_ref[...],
                     preferred_element_type=jnp.float32) + bs_ref[...]
        y = jnp.maximum(y + sc, 0.0)

    o_ref[...] = y.reshape(1, th, wo, cout).astype(o_ref.dtype)


# ---------------------------------------------------------------------------
# Wrapper
# ---------------------------------------------------------------------------
def _phase_split(xp, stride):
    """(N, Hp, Wp, C) padded NHWC -> (N*s*s, Hp/s, Wp/s, C).

    Element [n*s*s + (r%s)*s + (c%s), r//s, c//s, :] == xp[n, r, c, :], so a
    stride-s 3x3 tap becomes a contiguous slice of one phase image in-kernel.
    """
    if stride == 1:
        return xp
    n, hp, wp, c = xp.shape
    ph, pw = (-hp) % stride, (-wp) % stride
    if ph or pw:
        xp = jnp.pad(xp, ((0, 0), (0, ph), (0, pw), (0, 0)))
        hp, wp = hp + ph, wp + pw
    x6 = xp.reshape(n, hp // stride, stride, wp // stride, stride, c)
    x6 = jnp.transpose(x6, (0, 2, 4, 1, 3, 5))
    return x6.reshape(n * stride * stride, hp // stride, wp // stride, c)


def _pick_row_tile(n, ho, wo, cin_p, cout_p, budget=4 << 20, min_steps=8):
    """Largest divisor of Ho whose row-tile working set fits `budget` and which
    still leaves >= min_steps pipeline steps (2 TCs on v7x want several each)."""
    per_row = wo * (9 * cin_p * 2 + 2 * cout_p * 4)      # im2col bf16 + acc/out f32
    target = max(1, budget // max(per_row, 1))
    if n * ho >= min_steps:
        target = min(target, max(1, (n * ho) // min_steps))
    th = 1
    for d in range(1, ho + 1):
        if ho % d == 0 and d <= target:
            th = d
    return th


def fused_conv3x3_bn_relu(x, w_km, bias, *, stride=1, shortcut=None,
                          out_dtype=jnp.float32):
    """Fused 3x3 conv (pad=1) + folded BN + ReLU, optional fused residual.

    x        : (N, H, W, Cin_p) bf16, channel-padded to a multiple of 128
    w_km     : (9*Cin_p, Cout_p) bf16, im2col weight layout, BN scale folded in
    bias     : (Cout_p,) f32 folded BN bias (conv bias + BN shift)
    shortcut : None | ("identity", sc_nhwc bf16) | ("conv", xs bf16, ws bf16, bs f32)
    returns  : (N, Ho, Wo, Cout_p) in out_dtype (channel pad kept lane-dense)
    """
    n, h, wd, cin_p = x.shape
    cout_p = w_km.shape[-1]
    ho = (h - 1) // stride + 1
    wo = (wd - 1) // stride + 1

    xp = jnp.pad(x, ((0, 0), (1, 1), (1, 1), (0, 0)))     # spatial pad = 1
    xph = _phase_split(xp, stride)                        # (N*s*s, Hq, Wq, Cin_p)
    _, hq, wq, _ = xph.shape

    th = _pick_row_tile(n, ho, wo, cin_p, cout_p)
    grid = (n, ho // th)

    in_specs = [
        pl.BlockSpec((stride * stride, hq, wq, cin_p), lambda i, j: (i, 0, 0, 0)),
        pl.BlockSpec((9 * cin_p, cout_p), lambda i, j: (0, 0)),
        pl.BlockSpec((1, cout_p), lambda i, j: (0, 0)),
    ]
    args = [xph, w_km, bias.reshape(1, cout_p).astype(jnp.float32)]

    bytesz = lambda shape, dt: int(np.prod(shape)) * jnp.dtype(dt).itemsize
    need = (2 * bytesz((stride * stride, hq, wq, cin_p), jnp.bfloat16)   # dbl-buf in
            + bytesz((9 * cin_p, cout_p), jnp.bfloat16)                  # weights
            + 2 * bytesz((1, th, wo, cout_p), out_dtype)                 # dbl-buf out
            + th * wo * (9 * cin_p * 2 + cout_p * 4))                    # im2col + acc

    kind = None if shortcut is None else shortcut[0]
    if kind == "identity":
        sc = shortcut[1]                                   # (N, Ho, Wo, Cout_p) bf16
        in_specs.append(pl.BlockSpec((1, th, wo, cout_p), lambda i, j: (i, j, 0, 0)))
        args.append(sc)
        need += 2 * bytesz((1, th, wo, cout_p), jnp.bfloat16)
    elif kind == "conv":
        _, xs, ws, bs = shortcut
        cs = xs.shape[-1]
        in_specs += [
            pl.BlockSpec((1, th, wo, cs), lambda i, j: (i, j, 0, 0)),
            pl.BlockSpec((cs, cout_p), lambda i, j: (0, 0)),
            pl.BlockSpec((1, cout_p), lambda i, j: (0, 0)),
        ]
        args += [xs, ws, bs.reshape(1, cout_p).astype(jnp.float32)]
        need += (2 * bytesz((1, th, wo, cs), jnp.bfloat16)
                 + bytesz((cs, cout_p), jnp.bfloat16))

    vmem_limit = int(min(max(2 * need, 32 * 1024 * 1024), 64 * 1024 * 1024))

    kernel = functools.partial(_fused_conv3x3_kernel, stride=stride, th=th,
                               shortcut=kind)
    return pl.pallas_call(
        kernel,
        out_shape=jax.ShapeDtypeStruct((n, ho, wo, cout_p), out_dtype),
        grid_spec=pltpu.PrefetchScalarGridSpec(
            num_scalar_prefetch=0,
            grid=grid,                                    # (batch, row tiles)
            in_specs=in_specs,
            out_specs=pl.BlockSpec((1, th, wo, cout_p), lambda i, j: (i, j, 0, 0)),
        ),
        compiler_params=pltpu.CompilerParams(
            dimension_semantics=("parallel", "parallel"),  # megacore-shardable
            vmem_limit_bytes=vmem_limit,
        ),
    )(*args)


# ---------------------------------------------------------------------------
# BN folding, parameter init, ResBlock forward + reference
# ---------------------------------------------------------------------------
def fold_bn(conv_bias, gamma, beta, mean, var):
    s = gamma / jnp.sqrt(var + EPS)
    b = (conv_bias - mean) * s + beta
    return s, b


def init_resblock_params(key, cin, cout, downsample):
    ks = jax.random.split(key, 18)
    n = lambda k, shape, sc=0.1: sc * jax.random.normal(k, shape, jnp.float32)
    p = {
        "w1": n(ks[0], (3, 3, cin, cout)),     # HWIO
        "b1": n(ks[1], (cout,)),
        "w2": n(ks[2], (3, 3, cout, cout)),
        "b2": n(ks[3], (cout,)),
        "bn1_g": 1.0 + n(ks[4], (cout,)),
        "bn1_b": n(ks[5], (cout,)),
        "bn1_m": n(ks[6], (cout,)),
        "bn1_v": jnp.abs(n(ks[7], (cout,), 1.0)) + 0.5,
        "bn2_g": 1.0 + n(ks[8], (cout,)),
        "bn2_b": n(ks[9], (cout,)),
        "bn2_m": n(ks[10], (cout,)),
        "bn2_v": jnp.abs(n(ks[11], (cout,), 1.0)) + 0.5,
    }
    if downsample:
        p.update({
            "ws": n(ks[12], (1, 1, cin, cout)),
            "bs": n(ks[13], (cout,)),
            "bns_g": 1.0 + n(ks[14], (cout,)),
            "bns_b": n(ks[15], (cout,)),
            "bns_m": n(ks[16], (cout,)),
            "bns_v": jnp.abs(n(ks[17], (cout,), 1.0)) + 0.5,
        })
    return p


def resblock_forward(x_nchw, p, downsample):
    x = jnp.transpose(x_nchw, (0, 2, 3, 1)).astype(jnp.float32)      # NHWC
    cin = x.shape[-1]
    cout = p["w1"].shape[-1]
    cin_p = _round_up(cin, LANES)
    cout_p = _round_up(cout, LANES)
    stride1 = 2 if downsample else 1

    # Fold eval-mode BN into each conv (scale -> weights, rest -> bias), pad
    # channels to 128 lanes, and lay the weights out for the im2col matmul.
    s1, b1 = fold_bn(p["b1"], p["bn1_g"], p["bn1_b"], p["bn1_m"], p["bn1_v"])
    w1 = jnp.pad(p["w1"] * s1, ((0, 0), (0, 0), (0, cin_p - cin), (0, cout_p - cout)))
    w1 = w1.reshape(9 * cin_p, cout_p).astype(jnp.bfloat16)
    b1p = _pad_last(b1, cout_p)

    s2, b2 = fold_bn(p["b2"], p["bn2_g"], p["bn2_b"], p["bn2_m"], p["bn2_v"])
    w2 = jnp.pad(p["w2"] * s2, ((0, 0), (0, 0), (0, cout_p - cout), (0, cout_p - cout)))
    w2 = w2.reshape(9 * cout_p, cout_p).astype(jnp.bfloat16)
    b2p = _pad_last(b2, cout_p)

    xpc = _pad_last(x, cin_p).astype(jnp.bfloat16)        # (N,H,W,Cin_p) bf16

    # conv1 + bn1 + relu  (stays bf16 + channel-padded on its way to conv2)
    y1 = fused_conv3x3_bn_relu(xpc, w1, b1p, stride=stride1,
                               out_dtype=jnp.bfloat16)

    # conv2 + bn2 + relu + residual add + relu, all fused in one kernel.
    if downsample:
        ss, bs = fold_bn(p["bs"], p["bns_g"], p["bns_b"], p["bns_m"], p["bns_v"])
        ws = p["ws"].reshape(cin, cout) * ss
        ws = jnp.pad(ws, ((0, cin_p - cin), (0, cout_p - cout))).astype(jnp.bfloat16)
        xs = xpc[:, ::2, ::2, :]                 # 1x1 stride-2 conv taps (bf16)
        shortcut = ("conv", xs, ws, _pad_last(bs, cout_p))
    else:
        shortcut = ("identity", xpc)             # cin == cout  ->  cin_p == cout_p

    y2 = fused_conv3x3_bn_relu(y1, w2, b2p, stride=1, shortcut=shortcut,
                               out_dtype=jnp.float32)
    # Drop the channel padding and go back to NCHW.
    return jnp.transpose(y2[..., :cout], (0, 3, 1, 2))


def resblock_reference(x_nchw, p, downsample):
    x = jnp.transpose(x_nchw, (0, 2, 3, 1)).astype(jnp.float32)
    dn = ("NHWC", "HWIO", "NHWC")
    hi = lax.Precision.HIGHEST
    bn = lambda y, g, b, m, v: (y - m) / jnp.sqrt(v + EPS) * g + b
    stride1 = 2 if downsample else 1

    if downsample:
        sc = lax.conv_general_dilated(x, p["ws"], (2, 2), "VALID",
                                      dimension_numbers=dn, precision=hi) + p["bs"]
        sc = bn(sc, p["bns_g"], p["bns_b"], p["bns_m"], p["bns_v"])
    else:
        sc = x

    y = lax.conv_general_dilated(x, p["w1"], (stride1, stride1),
                                 ((1, 1), (1, 1)), dimension_numbers=dn,
                                 precision=hi) + p["b1"]
    y = jnp.maximum(bn(y, p["bn1_g"], p["bn1_b"], p["bn1_m"], p["bn1_v"]), 0.0)
    y = lax.conv_general_dilated(y, p["w2"], (1, 1),
                                 ((1, 1), (1, 1)), dimension_numbers=dn,
                                 precision=hi) + p["b2"]
    y = jnp.maximum(bn(y, p["bn2_g"], p["bn2_b"], p["bn2_m"], p["bn2_v"]), 0.0)
    y = jnp.maximum(y + sc, 0.0)
    return jnp.transpose(y, (0, 3, 1, 2))


# ---------------------------------------------------------------------------
if __name__ == "__main__":
    key = jax.random.PRNGKey(0)

    # case 1: downsample=True, in_channels != out_channels
    k_p1, k_x1, k_p2, k_x2 = jax.random.split(key, 4)
    p1 = init_resblock_params(k_p1, 4, 8, downsample=True)
    x1 = jax.random.normal(k_x1, (2, 4, 16, 16), jnp.float32)        # NCHW
    out1 = jax.block_until_ready(resblock_forward(x1, p1, downsample=True))
    ref1 = jax.block_until_ready(resblock_reference(x1, p1, downsample=True))

    # case 2: downsample=False, identity shortcut (in == out channels)
    p2 = init_resblock_params(k_p2, 8, 8, downsample=False)
    x2 = jax.random.normal(k_x2, (2, 8, 16, 16), jnp.float32)        # NCHW
    out2 = jax.block_until_ready(resblock_forward(x2, p2, downsample=False))
    ref2 = jax.block_until_ready(resblock_reference(x2, p2, downsample=False))

    assert out1.shape == (2, 8, 8, 8), out1.shape
    assert out2.shape == (2, 8, 16, 16), out2.shape
    # bf16 MXU feeds + bf16 shortcut (f32 accumulation) vs. an all-f32
    # HIGHEST-precision reference -> 3e-2 tolerance.
    np.testing.assert_allclose(np.asarray(out1), np.asarray(ref1),
                               atol=3e-2, rtol=3e-2)
    np.testing.assert_allclose(np.asarray(out2), np.asarray(ref2),
                               atol=3e-2, rtol=3e-2)

    print("KERNEL_OK")
</pallas_src>

<mosaic_0001>
module attributes {stable_mosaic.version = 11 : i64} {
  func.func @_fused_conv3x3_kernel(%arg0: i32, %arg1: i32, %arg2: memref<4x9x9x128xbf16, #tpu.memory_space<vmem>>, %arg3: memref<1152x128xbf16, #tpu.memory_space<vmem>>, %arg4: memref<1x128xf32, #tpu.memory_space<vmem>>, %arg5: memref<1x2x8x128xbf16, #tpu.memory_space<vmem>>) attributes {dimension_semantics = [#tpu.dimension_semantics<parallel>, #tpu.dimension_semantics<parallel>], iteration_bounds = array<i64: 2, 4>, scalar_prefetch = 0 : i64, scratch_operands = 0 : i64, tpu.core_type = #tpu.core_type<tc>, window_params = [{transform_indices = @transform_0, window_bounds = array<i64: 4, 9, 9, 128>}, {pipeline_mode = #tpu.pipeline_mode<synchronous>, transform_indices = @transform_1, window_bounds = array<i64: 1152, 128>}, {pipeline_mode = #tpu.pipeline_mode<synchronous>, transform_indices = @transform_2, window_bounds = array<i64: 1, 128>}, {transform_indices = @transform_3, window_bounds = array<i64: 1, 2, 8, 128>}]} {
    %c2_i32 = arith.constant 2 : i32
    %0 = arith.muli %arg1, %c2_i32 : i32
    %1 = tpu.assume_multiple %0, 2 : i32
    %c0_i32 = arith.constant 0 : i32
    %2 = arith.addi %1, %c0_i32 : i32
    %c0 = arith.constant 0 : index
    %3 = arith.index_cast %2 : i32 to index
    %c0_0 = arith.constant 0 : index
    %c0_1 = arith.constant 0 : index
    %4 = vector.load %arg2[%c0, %3, %c0_0, %c0_1] : memref<4x9x9x128xbf16, #tpu.memory_space<vmem>>, vector<1x2x8x128xbf16>
    %5 = vector.shape_cast %4 : vector<1x2x8x128xbf16> to vector<2x8x128xbf16>
    %c0_i32_2 = arith.constant 0 : i32
    %6 = arith.addi %1, %c0_i32_2 : i32
    %c1 = arith.constant 1 : index
    %7 = arith.index_cast %6 : i32 to index
    %c0_3 = arith.constant 0 : index
    %c0_4 = arith.constant 0 : index
    %8 = vector.load %arg2[%c1, %7, %c0_3, %c0_4] : memref<4x9x9x128xbf16, #tpu.memory_space<vmem>>, vector<1x2x8x128xbf16>
    %9 = vector.shape_cast %8 : vector<1x2x8x128xbf16> to vector<2x8x128xbf16>
    %c0_i32_5 = arith.constant 0 : i32
    %10 = arith.addi %1, %c0_i32_5 : i32
    %c0_6 = arith.constant 0 : index
    %11 = arith.index_cast %10 : i32 to index
    %c1_7 = arith.constant 1 : index
    %c0_8 = arith.constant 0 : index
    %12 = vector.load %arg2[%c0_6, %11, %c1_7, %c0_8] : memref<4x9x9x128xbf16, #tpu.memory_space<vmem>>, vector<1x2x8x128xbf16>
    %13 = vector.shape_cast %12 : vector<1x2x8x128xbf16> to vector<2x8x128xbf16>
    %c0_i32_9 = arith.constant 0 : i32
    %14 = arith.addi %1, %c0_i32_9 : i32
    %c2 = arith.constant 2 : index
    %15 = arith.index_cast %14 : i32 to index
    %c0_10 = arith.constant 0 : index
    %c0_11 = arith.constant 0 : index
    %16 = vector.load %arg2[%c2, %15, %c0_10, %c0_11] : memref<4x9x9x128xbf16, #tpu.memory_space<vmem>>, vector<1x2x8x128xbf16>
    %17 = vector.shape_cast %16 : vector<1x2x8x128xbf16> to vector<2x8x128xbf16>
    %c0_i32_12 = arith.constant 0 : i32
    %18 = arith.addi %1, %c0_i32_12 : i32
    %c3 = arith.constant 3 : index
    %19 = arith.index_cast %18 : i32 to index
    %c0_13 = arith.constant 0 : index
    %c0_14 = arith.constant 0 : index
    %20 = vector.load %arg2[%c3, %19, %c0_13, %c0_14] : memref<4x9x9x128xbf16, #tpu.memory_space<vmem>>, vector<1x2x8x128xbf16>
    %21 = vector.shape_cast %20 : vector<1x2x8x128xbf16> to vector<2x8x128xbf16>
    %c0_i32_15 = arith.constant 0 : i32
    %22 = arith.addi %1, %c0_i32_15 : i32
    %c2_16 = arith.constant 2 : index
    %23 = arith.index_cast %22 : i32 to index
    %c1_17 = arith.constant 1 : index
    %c0_18 = arith.constant 0 : index
    %24 = vector.load %arg2[%c2_16, %23, %c1_17, %c0_18] : memref<4x9x9x128xbf16, #tpu.memory_space<vmem>>, vector<1x2x8x128xbf16>
    %25 = vector.shape_cast %24 : vector<1x2x8x128xbf16> to vector<2x8x128xbf16>
    %c1_i32 = arith.constant 1 : i32
    %26 = arith.addi %1, %c1_i32 : i32
    %c0_19 = arith.constant 0 : index
    %27 = arith.index_cast %26 : i32 to index
    %c0_20 = arith.constant 0 : index
    %c0_21 = arith.constant 0 : index
    %28 = vector.load %arg2[%c0_19, %27, %c0_20, %c0_21] : memref<4x9x9x128xbf16, #tpu.memory_space<vmem>>, vector<1x2x8x128xbf16>
    %29 = vector.shape_cast %28 : vector<1x2x8x128xbf16> to vector<2x8x128xbf16>
    %c1_i32_22 = arith.constant 1 : i32
    %30 = arith.addi %1, %c1_i32_22 : i32
    %c1_23 = arith.constant 1 : index
    %31 = arith.index_cast %30 : i32 to index
    %c0_24 = arith.constant 0 : index
    %c0_25 = arith.constant 0 : index
    %32 = vector.load %arg2[%c1_23, %31, %c0_24, %c0_25] : memref<4x9x9x128xbf16, #tpu.memory_space<vmem>>, vector<1x2x8x128xbf16>
    %33 = vector.shape_cast %32 : vector<1x2x8x128xbf16> to vector<2x8x128xbf16>
    %c1_i32_26 = arith.constant 1 : i32
    %34 = arith.addi %1, %c1_i32_26 : i32
    %c0_27 = arith.constant 0 : index
    %35 = arith.index_cast %34 : i32 to index
    %c1_28 = arith.constant 1 : index
    %c0_29 = arith.constant 0 : index
    %36 = vector.load %arg2[%c0_27, %35, %c1_28, %c0_29] : memref<4x9x9x128xbf16, #tpu.memory_space<vmem>>, vector<1x2x8x128xbf16>
    %37 = vector.shape_cast %36 : vector<1x2x8x128xbf16> to vector<2x8x128xbf16>
    %38 = tpu.concatenate %5, %9, %13, %17, %21, %25, %29, %33, %37 in 2 : vector<2x8x128xbf16>, vector<2x8x128xbf16>, vector<2x8x128xbf16>, vector<2x8x128xbf16>, vector<2x8x128xbf16>, vector<2x8x128xbf16>, vector<2x8x128xbf16>, vector<2x8x128xbf16>, vector<2x8x128xbf16> -> vector<2x8x1152xbf16>
    %39 = vector.shape_cast %38 : vector<2x8x1152xbf16> to vector<16x1152xbf16>
    %c0_30 = arith.constant 0 : index
    %c0_31 = arith.constant 0 : index
    %40 = vector.load %arg3[%c0_30, %c0_31] : memref<1152x128xbf16, #tpu.memory_space<vmem>>, vector<1152x128xbf16>
    %cst = arith.constant dense<0.000000e+00> : vector<16x128xf32>
    %41 = tpu.matmul %39, %40, %cst {dimension_numbers = #tpu.dot_dimension_numbers<[1], [0], [0], [1], [0, 0, 1, 1], [], []>} : vector<16x1152xbf16>, vector<1152x128xbf16>, vector<16x128xf32> -> vector<16x128xf32>
    %c0_32 = arith.constant 0 : index
    %c0_33 = arith.constant 0 : index
    %42 = vector.load %arg4[%c0_32, %c0_33] : memref<1x128xf32, #tpu.memory_space<vmem>>, vector<1x128xf32>
    %43 = vector.broadcast %42 : vector<1x128xf32> to vector<16x128xf32>
    %44 = arith.addf %41, %43 : vector<16x128xf32>
    %cst_34 = arith.constant 0.000000e+00 : f32
    %45 = vector.broadcast %cst_34 : f32 to vector<16x128xf32>
    %46 = arith.maximumf %44, %45 : vector<16x128xf32>
    %47 = vector.shape_cast %46 : vector<16x128xf32> to vector<1x2x8x128xf32>
    %48 = arith.truncf %47 : vector<1x2x8x128xf32> to vector<1x2x8x128xbf16>
    %c0_35 = arith.constant 0 : index
    %c0_36 = arith.constant 0 : index
    %c0_37 = arith.constant 0 : index
    %c0_38 = arith.constant 0 : index
    %49 = vector.load %arg5[%c0_35, %c0_36, %c0_37, %c0_38] : memref<1x2x8x128xbf16, #tpu.memory_space<vmem>>, vector<1x2x8x128xbf16>
    tpu.vector_store %arg5[%c0_35, %c0_36, %c0_37, %c0_38], %48 {strides = array<i32>} : memref<1x2x8x128xbf16, #tpu.memory_space<vmem>>, vector<1x2x8x128xbf16>,
    return
  }
  func.func @transform_0(%arg0: i32, %arg1: i32) -> (i32, i32, i32, i32) {
    %c0_i32 = arith.constant 0 : i32
    %c0_i32_0 = arith.constant 0 : i32
    %c0_i32_1 = arith.constant 0 : i32
    %c0_i32_2 = arith.constant 0 : i32
    return %arg0, %c0_i32, %c0_i32_0, %c0_i32_1 : i32, i32, i32, i32
  }
  func.func @transform_1(%arg0: i32, %arg1: i32) -> (i32, i32) {
    %c0_i32 = arith.constant 0 : i32
    %c0_i32_0 = arith.constant 0 : i32
    %c0_i32_1 = arith.constant 0 : i32
    return %c0_i32, %c0_i32_0 : i32, i32
  }
  func.func @transform_2(%arg0: i32, %arg1: i32) -> (i32, i32) {
    %c0_i32 = arith.constant 0 : i32
    %c0_i32_0 = arith.constant 0 : i32
    %c0_i32_1 = arith.constant 0 : i32
    return %c0_i32, %c0_i32_0 : i32, i32
  }
  func.func @transform_3(%arg0: i32, %arg1: i32) -> (i32, i32, i32, i32) {
    %c0_i32 = arith.constant 0 : i32
    %c0_i32_0 = arith.constant 0 : i32
    %c0_i32_1 = arith.constant 0 : i32
    return %arg0, %arg1, %c0_i32, %c0_i32_0 : i32, i32, i32, i32
  }
}

</mosaic_0001>

<llo_original>
// kernel: tpu_custom_call.1
$region0: #{tpu_custom_call.1}
  #allocation0 [shape = 'u32[]', space=smem, size = 0x4, offset = 0x4, fixed_abs, tag = 'smem constant byte address 0x4 - core index']
  #allocation1 [shape = 'u32[144,128]{1,0:T(1,128)}', space=vmem, size = 0x12000, scoped, tag = 'internal scratch']
  %s0 = inlined_call_operand.vmem [shape: bf16[8,9,9,128], index: 0, kind: input, shape index: {}]
  %s1 = inlined_call_operand.vmem [shape: bf16[1152,128], index: 1, kind: input, shape index: {}]
  %s2 = inlined_call_operand.vmem [shape: f32[1,128], index: 2, kind: input, shape index: {}]
  %s3 = inlined_call_operand.hbm [shape: bf16[2,8,8,128], index: 3, kind: output, shape index: {}]
  %s4 = sld [smem:[#allocation0]]
  $region45: #{tpu_custom_call.1} parent=0
    _
  %s6 = ssub.s32 1, %s4
  %s7 = scalar_select 0, %s6, %s4
  $region1: #{tpu_custom_call.1} parent=0
    #allocation2 [shape = 'u8[8192]{0}', space=vmem, size = 0x2000, scoped, tag = 'output window, operand 0']
    #allocation3 [shape = 's32[2]{0}', space=sflag, size = 0x8, scoped, tag = 'scoped memory for tpu_custom_call.1']
    %8 = vsyncpa [#allocation3], 0
    %s9 = scalar_lea.sflag [#allocation3], 1
    %10 = vsyncpa %s9, 0
    loop: start=0, step=1, limit=10
    $region2: #{tpu_custom_call.1} parent=1 // loop_pre_header
      _
    $region3: #{tpu_custom_call.1} parent=1 // loop_header
      %s12 = sphi 0, %s16
      %p13 = scmp.ge.s32.totalorder %s12, 10
      %s19 = sphi 0, %s31
      %s20 = sphi 0, %s27
      %s21 = sphi 0, %s19
      %s22 = sphi 0, %s20
      %s23 = sphi 0, %s21
      %s24 = sphi 0, %s22
      %s34 = sphi 0, %s36
      %s37 = sphi 0, %s34
      %s38 = sphi 0, %s37
      %s54 = sphi 0, %s38
      %s58 = sphi 0, %s58
      %s60 = sphi 0, %s58
      %s61 = sphi 0, %s60
      %s75 = sphi 0, %s61
      %s79 = sphi 0, %s79
      %s81 = sphi 0, %s79
      %s82 = sphi 0, %s81
      %s96 = sphi 0, %s82
      %s104 = sphi 0, %s106
      %s107 = sphi 0, %s104
      %s108 = sphi 0, %s107
      %s124 = sphi 0, %s108
    $region4: #{tpu_custom_call.1} parent=1 // loop_header_branch
      %15 = sbr.rel (%p13) target = $region8
    $region5: #{tpu_custom_call.1} parent=1 // loop_body
      %s17 = ssub.s32 %s12, 1
      %s18 = ssub.s32 %s12, 2
      %s25 = sadd.s32 1, %s20
      %p26 = scmp.ge.s32.totalorder %s25, 4
      %s27 = scalar_select %p26, 0, %s25
      %s28 = sadd.s32 1, %s19
      %s29 = scalar_select %p26, %s28, %s19
      %p30 = scmp.ge.s32.totalorder %s29, 2
      %s31 = scalar_select %p30, 0, %s29
      %s32 = ssub.s32 %s19, %s31
      %p33 = scmp.eq.s32.totalorder %s32, 0
      %s35 = sadd.s32 %s34, 1
      %s36 = scalar_select %p33, %s34, %s35
      %p39 = pneg %p33
      %p40 = scmp.eq.s32.totalorder %s12, 7
      %p41 = por %p39, %p40
      %p42 = scmp.ne.s32.totalorder %s34, %s37
      %p43 = scmp.eq.s32.totalorder %s12, 0
      %p44 = por %p42, %p43
      %p45 = scmp.ne.s32.totalorder %s34, %s37
      %p46 = scmp.eq.s32.totalorder %s17, 7
      %p47 = por %p45, %p46
      %p48 = scmp.ne.s32.totalorder %s37, %s38
      %p49 = scmp.eq.s32.totalorder %s17, 0
      %p50 = por %p48, %p49
      %p51 = scmp.ne.s32.totalorder %s37, %s38
      %p52 = scmp.eq.s32.totalorder %s18, 7
      %p53 = por %p51, %p52
      %p55 = scmp.ne.s32.totalorder %s38, %s54
      %p56 = scmp.eq.s32.totalorder %s18, 0
      %p57 = por %p55, %p56
      %s59 = sadd.s32 %s58, 1
      %p62 = scmp.eq.s32.totalorder %s12, 7
      %p63 = scmp.ne.s32.totalorder %s58, %s60
      %p64 = scmp.eq.s32.totalorder %s12, 0
      %p65 = por %p63, %p64
      %p66 = scmp.ne.s32.totalorder %s58, %s60
      %p67 = scmp.eq.s32.totalorder %s17, 7
      %p68 = por %p66, %p67
      %p69 = scmp.ne.s32.totalorder %s60, %s61
      %p70 = scmp.eq.s32.totalorder %s17, 0
      %p71 = por %p69, %p70
      %p72 = scmp.ne.s32.totalorder %s60, %s61
      %p73 = scmp.eq.s32.totalorder %s18, 7
      %p74 = por %p72, %p73
      %p76 = scmp.ne.s32.totalorder %s61, %s75
      %p77 = scmp.eq.s32.totalorder %s18, 0
      %p78 = por %p76, %p77
      %s80 = sadd.s32 %s79, 1
      %p83 = scmp.eq.s32.totalorder %s12, 7
      %p84 = scmp.ne.s32.totalorder %s79, %s81
      %p85 = scmp.eq.s32.totalorder %s12, 0
      %p86 = por %p84, %p85
      %p87 = scmp.ne.s32.totalorder %s79, %s81
      %p88 = scmp.eq.s32.totalorder %s17, 7
      %p89 = por %p87, %p88
      %p90 = scmp.ne.s32.totalorder %s81, %s82
      %p91 = scmp.eq.s32.totalorder %s17, 0
      %p92 = por %p90, %p91
      %p93 = scmp.ne.s32.totalorder %s81, %s82
      %p94 = scmp.eq.s32.totalorder %s18, 7
      %p95 = por %p93, %p94
      %p97 = scmp.ne.s32.totalorder %s82, %s96
      %p98 = scmp.eq.s32.totalorder %s18, 0
      %p99 = por %p97, %p98
      %s100 = ssub.s32 %s19, %s31
      %s101 = ssub.s32 %s20, %s27
      %s102 = sor.u32 %s100, %s101
      %p103 = scmp.eq.s32.totalorder %s102, 0
      %s105 = sadd.s32 %s104, 1
      %s106 = scalar_select %p103, %s104, %s105
      %p109 = pneg %p103
      %p110 = scmp.eq.s32.totalorder %s12, 7
      %p111 = por %p109, %p110
      %p112 = scmp.ne.s32.totalorder %s104, %s107
      %p113 = scmp.eq.s32.totalorder %s12, 0
      %p114 = por %p112, %p113
      %p115 = scmp.ne.s32.totalorder %s104, %s107
      %p116 = scmp.eq.s32.totalorder %s17, 7
      %p117 = por %p115, %p116
      %p118 = scmp.ne.s32.totalorder %s107, %s108
      %p119 = scmp.eq.s32.totalorder %s17, 0
      %p120 = por %p118, %p119
      %p121 = scmp.ne.s32.totalorder %s107, %s108
      %p122 = scmp.eq.s32.totalorder %s18, 7
      %p123 = por %p121, %p122
      %p125 = scmp.ne.s32.totalorder %s108, %s124
      %p126 = scmp.eq.s32.totalorder %s18, 0
      %p127 = por %p125, %p126
      %p128 = scmp.le.s32.totalorder 1, %s12
      %p129 = scmp.lt.s32.totalorder %s12, 9
      %p130 = pnand %p128, %p129
      %p131 = pneg %p130
      // Predicated region
      $region9: #{tpu_custom_call.1} parent=5 // pred_check
        _
      $region10: #{tpu_custom_call.1} parent=5 // pred_check_branch
        %133 = sbr.rel (%p130) target = $region12
      $region11: #{tpu_custom_call.1} parent=5 // pred_region
        %s134 = ssub.s32 %s12, 1
        // Predicated region
        $region13: #{tpu_custom_call.1} parent=11 // pred_check
          %p135 = pneg %p71
        $region14: #{tpu_custom_call.1} parent=11 // pred_check_branch
          %137 = sbr.rel (%p135) target = $region16
        $region15: #{tpu_custom_call.1} parent=11 // pred_region
          _
        $region16: #{tpu_custom_call.1} parent=11 // pred_fallthru
          _
        // Predicated region
        $region17: #{tpu_custom_call.1} parent=11 // pred_check
          %p138 = pneg %p92
        $region18: #{tpu_custom_call.1} parent=11 // pred_check_branch
          %140 = sbr.rel (%p138) target = $region20
        $region19: #{tpu_custom_call.1} parent=11 // pred_region
          _
        $region20: #{tpu_custom_call.1} parent=11 // pred_fallthru
          _
      $region12: #{tpu_custom_call.1} parent=5 // pred_fallthru
        _
      %p141 = scmp.lt.s32.totalorder %s12, 8
      // Predicated region
      $region21: #{tpu_custom_call.1} parent=5 // pred_check
        %p142 = pneg %p141
      $region22: #{tpu_custom_call.1} parent=5 // pred_check_branch
        %144 = sbr.rel (%p142) target = $region24
      $region23: #{tpu_custom_call.1} parent=5 // pred_region
        // Predicated region
        $region25: #{tpu_custom_call.1} parent=23 // pred_check
          %p145 = pneg %p44
        $region26: #{tpu_custom_call.1} parent=23 // pred_check_branch
          %147 = sbr.rel (%p145) target = $region28
        $region27: #{tpu_custom_call.1} parent=23 // pred_region
          %s148 = smul.u32 4, %s19
          %p149 = scmp.lt.s32.totalorder %s148, 7
          %s150 = scalar_select %p149, %s148, 7
          %s151 = smul.addr %s150, 18
          %s152 = smul.addr %s151, 4
          %s153 = scalar_lea.vmem %s0, %s152
          %s154 = smul.u32 4, %s19
        $region28: #{tpu_custom_call.1} parent=23 // pred_fallthru
          _
      $region24: #{tpu_custom_call.1} parent=5 // pred_fallthru
        _
      %p155 = scmp.le.s32.totalorder 1, %s12
      %p156 = scmp.lt.s32.totalorder %s12, 9
      %p157 = pnand %p155, %p156
      %p158 = pneg %p157
      // Predicated region
      $region29: #{tpu_custom_call.1} parent=5 // pred_check
        _
      $region30: #{tpu_custom_call.1} parent=5 // pred_check_branch
        %160 = sbr.rel (%p157) target = $region32
      $region31: #{tpu_custom_call.1} parent=5 // pred_region
        %s161 = ssub.s32 %s12, 1
        %s162 = smul.u32 4, %s21
        %p163 = scmp.lt.s32.totalorder %s162, 7
        %s164 = scalar_select %p163, %s162, 7
        %s165 = smul.addr %s164, 18
        %s166 = smul.addr %s165, 4
        %s167 = scalar_lea.vmem %s0, %s166
        %p168 = pneg %p50
        %p169 = pneg %p47
        %p170 = pneg %p71
        %p171 = pneg %p68
        %p172 = pneg %p92
        %p173 = pneg %p89
        %p174 = pneg %p120
        %p175 = pneg %p117
        %s176 = sand.u32 %s107, 1
        %s177 = scalar_lea.sflag [#allocation3], %s176
        %s178 = sand.u32 %s107, 1
        %s179 = smul.addr %s178, 8
        %s180 = scalar_lea.vmem [#allocation2], %s179
        %s181 = smul.u32 4, %s21
        %p182 = scmp.lt.s32.totalorder %s181, 7
        %s183 = scalar_select %p182, %s181, 7
        %s184 = smul.addr %s183, 18
        %s185 = smul.addr %s184, 4
        %s186 = scalar_lea.vmem %s0, %s185
        %s187 = smul.u32 4, %s21
        %s188 = smul.u32 2, %s22
        %s190 = smul.u32 %s22, 2
        %s191 = smul.u32 %s190, 2
        %s192 = smul.addr %s191, 4
        %s193 = scalar_lea.vmem %s186, %s192
        %v194 = vld [vmem:[%s193] sm:$0xf]
        %v195 = vld [vmem:[%s193 + $0x8] sm:$0xf]
        %s196 = sadd.s32 %s191, 18
        %s197 = smul.addr %s196, 4
        %s198 = scalar_lea.vmem %s186, %s197
        %v199 = vld [vmem:[%s198] sm:$0xf]
        %v200 = vld [vmem:[%s198 + $0x8] sm:$0xf]
        %v201 = vld [vmem:[%s193 + $0x4] sm:$0x1]
        %v202 = vld [vmem:[%s193 + $0xc] sm:$0x1]
        %s203 = sadd.s32 %s191, 36
        %s204 = smul.addr %s203, 4
        %s205 = scalar_lea.vmem %s186, %s204
        %v206 = vld [vmem:[%s205] sm:$0xf]
        %v207 = vld [vmem:[%s205 + $0x8] sm:$0xf]
        %s208 = sadd.s32 %s191, 54
        %s209 = smul.addr %s208, 4
        %s210 = scalar_lea.vmem %s186, %s209
        %v211 = vld [vmem:[%s210] sm:$0xf]
        %v212 = vld [vmem:[%s210 + $0x8] sm:$0xf]
        %v213 = vld [vmem:[%s205 + $0x4] sm:$0x1]
        %v214 = vld [vmem:[%s205 + $0xc] sm:$0x1]
        %s215 = sadd.s32 %s190, 1
        %s216 = smul.u32 %s215, 2
        %s217 = smul.addr %s216, 4
        %s218 = scalar_lea.vmem %s186, %s217
        %v219 = vld [vmem:[%s218] sm:$0xf]
        %v220 = vld [vmem:[%s218 + $0x8] sm:$0xf]
        %s221 = sadd.s32 %s216, 18
        %s222 = smul.addr %s221, 4
        %s223 = scalar_lea.vmem %s186, %s222
        %v224 = vld [vmem:[%s223] sm:$0xf]
        %v225 = vld [vmem:[%s223 + $0x8] sm:$0xf]
        %v226 = vld [vmem:[%s218 + $0x4] sm:$0x1]
        %v227 = vld [vmem:[%s218 + $0xc] sm:$0x1]
        %v232 = vunpack.c.l.b16 %v194
        %v233 = vunpack.c.l.b16 %v201
        %v234 = vunpack.c.l.b16 %v195
        %v235 = vunpack.c.l.b16 %v202
        %v236 = vpack.c.b16 %v233, %v232
        %v237 = vpack.c.b16 %v235, %v234
        %v239 = vshrl.u32 %v236, 16
        %v241 = vshll.u32 %v236, 16
        %v243 = vrot.slane %v241, 1
        %v244 = vor.u32 %v239, %v243
        %v246 = vshrl.u32 %v237, 16
        %v248 = vshll.u32 %v237, 16
        %v250 = vrot.slane %v248, 1
        %v251 = vor.u32 %v246, %v250
        %v256 = vunpack.c.l.b16 %v206
        %v257 = vunpack.c.l.b16 %v213
        %v258 = vunpack.c.l.b16 %v207
        %v259 = vunpack.c.l.b16 %v214
        %v260 = vpack.c.b16 %v257, %v256
        %v261 = vpack.c.b16 %v259, %v258
        %v263 = vshrl.u32 %v260, 16
        %v265 = vshll.u32 %v260, 16
        %v267 = vrot.slane %v265, 1
        %v268 = vor.u32 %v263, %v267
        %v270 = vshrl.u32 %v261, 16
        %v272 = vshll.u32 %v261, 16
        %v274 = vrot.slane %v272, 1
        %v275 = vor.u32 %v270, %v274
        %v280 = vunpack.c.l.b16 %v219
        %v281 = vunpack.c.l.b16 %v226
        %v282 = vunpack.c.l.b16 %v220
        %v283 = vunpack.c.l.b16 %v227
        %v284 = vpack.c.b16 %v281, %v280
        %v285 = vpack.c.b16 %v283, %v282
        %v287 = vshrl.u32 %v284, 16
        %v289 = vshll.u32 %v284, 16
        %v291 = vrot.slane %v289, 1
        %v292 = vor.u32 %v287, %v291
        %v294 = vshrl.u32 %v285, 16
        %v296 = vshll.u32 %v285, 16
        %v298 = vrot.slane %v296, 1
        %v299 = vor.u32 %v294, %v298
        %v306 = vunpack.c.l.b16 %v199
        %v307 = vunpack.c.l.b16 %v244
        %v308 = vunpack.c.l.b16 %v211
        %v309 = vunpack.c.l.b16 %v268
        %v310 = vunpack.c.l.b16 %v224
        %v311 = vunpack.c.l.b16 %v292
        %v312 = vunpack.c.l.b16 %v200
        %v313 = vunpack.c.l.b16 %v251
        %v314 = vunpack.c.l.b16 %v212
        %v315 = vunpack.c.l.b16 %v275
        %v316 = vunpack.c.l.b16 %v225
        %v317 = vunpack.c.l.b16 %v299
        %v318 = vld [vmem:[%s1] sm:$0xf]
        %v319 = vld [vmem:[%s1 + $0x4] sm:$0xf]
        %v320 = vld [vmem:[%s1 + $0x8] sm:$0xf]
        %v321 = vld [vmem:[%s1 + $0xc] sm:$0xf]
        %v322 = vld [vmem:[%s1 + $0x10] sm:$0xf]
        %v323 = vld [vmem:[%s1 + $0x14] sm:$0xf]
        %v324 = vld [vmem:[%s1 + $0x18] sm:$0xf]
        %v325 = vld [vmem:[%s1 + $0x1c] sm:$0xf]
        %v326 = vld [vmem:[%s1 + $0x20] sm:$0xf]
        %v327 = vld [vmem:[%s1 + $0x24] sm:$0xf]
        %v328 = vld [vmem:[%s1 + $0x28] sm:$0xf]
        %v329 = vld [vmem:[%s1 + $0x2c] sm:$0xf]
        %v330 = vld [vmem:[%s1 + $0x30] sm:$0xf]
        %v331 = vld [vmem:[%s1 + $0x34] sm:$0xf]
        %v332 = vld [vmem:[%s1 + $0x38] sm:$0xf]
        %v333 = vld [vmem:[%s1 + $0x3c] sm:$0xf]
        %v334 = vld [vmem:[%s1 + $0x40] sm:$0xf]
        %v335 = vld [vmem:[%s1 + $0x44] sm:$0xf]
        %v336 = vld [vmem:[%s1 + $0x48] sm:$0xf]
        %v337 = vld [vmem:[%s1 + $0x4c] sm:$0xf]
        %v338 = vld [vmem:[%s1 + $0x50] sm:$0xf]
        %v339 = vld [vmem:[%s1 + $0x54] sm:$0xf]
        %v340 = vld [vmem:[%s1 + $0x58] sm:$0xf]
        %v341 = vld [vmem:[%s1 + $0x5c] sm:$0xf]
        %v342 = vld [vmem:[%s1 + $0x60] sm:$0xf]
        %v343 = vld [vmem:[%s1 + $0x64] sm:$0xf]
        %v344 = vld [vmem:[%s1 + $0x68] sm:$0xf]
        %v345 = vld [vmem:[%s1 + $0x6c] sm:$0xf]
        %v346 = vld [vmem:[%s1 + $0x70] sm:$0xf]
        %v347 = vld [vmem:[%s1 + $0x74] sm:$0xf]
        %v348 = vld [vmem:[%s1 + $0x78] sm:$0xf]
        %v349 = vld [vmem:[%s1 + $0x7c] sm:$0xf]
        %v350 = vld [vmem:[%s1 + $0x80] sm:$0xf]
        %v351 = vld [vmem:[%s1 + $0x84] sm:$0xf]
        %v352 = vld [vmem:[%s1 + $0x88] sm:$0xf]
        %v353 = vld [vmem:[%s1 + $0x8c] sm:$0xf]
        %v354 = vld [vmem:[%s1 + $0x90] sm:$0xf]
        %v355 = vld [vmem:[%s1 + $0x94] sm:$0xf]
        %v356 = vld [vmem:[%s1 + $0x98] sm:$0xf]
        %v357 = vld [vmem:[%s1 + $0x9c] sm:$0xf]
        %v358 = vld [vmem:[%s1 + $0xa0] sm:$0xf]
        %v359 = vld [vmem:[%s1 + $0xa4] sm:$0xf]
        %v360 = vld [vmem:[%s1 + $0xa8] sm:$0xf]
        %v361 = vld [vmem:[%s1 + $0xac] sm:$0xf]
        %v362 = vld [vmem:[%s1 + $0xb0] sm:$0xf]
        %v363 = vld [vmem:[%s1 + $0xb4] sm:$0xf]
        %v364 = vld [vmem:[%s1 + $0xb8] sm:$0xf]
        %v365 = vld [vmem:[%s1 + $0xbc] sm:$0xf]
        %v366 = vld [vmem:[%s1 + $0xc0] sm:$0xf]
        %v367 = vld [vmem:[%s1 + $0xc4] sm:$0xf]
        %v368 = vld [vmem:[%s1 + $0xc8] sm:$0xf]
        %v369 = vld [vmem:[%s1 + $0xcc] sm:$0xf]
        %v370 = vld [vmem:[%s1 + $0xd0] sm:$0xf]
        %v371 = vld [vmem:[%s1 + $0xd4] sm:$0xf]
        %v372 = vld [vmem:[%s1 + $0xd8] sm:$0xf]
        %v373 = vld [vmem:[%s1 + $0xdc] sm:$0xf]
        %v374 = vld [vmem:[%s1 + $0xe0] sm:$0xf]
        %v375 = vld [vmem:[%s1 + $0xe4] sm:$0xf]
        %v376 = vld [vmem:[%s1 + $0xe8] sm:$0xf]
        %v377 = vld [vmem:[%s1 + $0xec] sm:$0xf]
        %v378 = vld [vmem:[%s1 + $0xf0] sm:$0xf]
        %v379 = vld [vmem:[%s1 + $0xf4] sm:$0xf]
        %v380 = vld [vmem:[%s1 + $0xf8] sm:$0xf]
        %v381 = vld [vmem:[%s1 + $0xfc] sm:$0xf]
        %v382 = vld [vmem:[%s1 + $0x100] sm:$0xf]
        %v383 = vld [vmem:[%s1 + $0x104] sm:$0xf]
        %v384 = vld [vmem:[%s1 + $0x108] sm:$0xf]
        %v385 = vld [vmem:[%s1 + $0x10c] sm:$0xf]
        %v386 = vld [vmem:[%s1 + $0x110] sm:$0xf]
        %v387 = vld [vmem:[%s1 + $0x114] sm:$0xf]
        %v388 = vld [vmem:[%s1 + $0x118] sm:$0xf]
        %v389 = vld [vmem:[%s1 + $0x11c] sm:$0xf]
        %v390 = vld [vmem:[%s1 + $0x120] sm:$0xf]
        %v391 = vld [vmem:[%s1 + $0x124] sm:$0xf]
        %v392 = vld [vmem:[%s1 + $0x128] sm:$0xf]
        %v393 = vld [vmem:[%s1 + $0x12c] sm:$0xf]
        %v394 = vld [vmem:[%s1 + $0x130] sm:$0xf]
        %v395 = vld [vmem:[%s1 + $0x134] sm:$0xf]
        %v396 = vld [vmem:[%s1 + $0x138] sm:$0xf]
        %v397 = vld [vmem:[%s1 + $0x13c] sm:$0xf]
        %v398 = vld [vmem:[%s1 + $0x140] sm:$0xf]
        %v399 = vld [vmem:[%s1 + $0x144] sm:$0xf]
        %v400 = vld [vmem:[%s1 + $0x148] sm:$0xf]
        %v401 = vld [vmem:[%s1 + $0x14c] sm:$0xf]
        %v402 = vld [vmem:[%s1 + $0x150] sm:$0xf]
        %v403 = vld [vmem:[%s1 + $0x154] sm:$0xf]
        %v404 = vld [vmem:[%s1 + $0x158] sm:$0xf]
        %v405 = vld [vmem:[%s1 + $0x15c] sm:$0xf]
        %v406 = vld [vmem:[%s1 + $0x160] sm:$0xf]
        %v407 = vld [vmem:[%s1 + $0x164] sm:$0xf]
        %v408 = vld [vmem:[%s1 + $0x168] sm:$0xf]
        %v409 = vld [vmem:[%s1 + $0x16c] sm:$0xf]
        %v410 = vld [vmem:[%s1 + $0x170] sm:$0xf]
        %v411 = vld [vmem:[%s1 + $0x174] sm:$0xf]
        %v412 = vld [vmem:[%s1 + $0x178] sm:$0xf]
        %v413 = vld [vmem:[%s1 + $0x17c] sm:$0xf]
        %v414 = vld [vmem:[%s1 + $0x180] sm:$0xf]
        %v415 = vld [vmem:[%s1 + $0x184] sm:$0xf]
        %v416 = vld [vmem:[%s1 + $0x188] sm:$0xf]
        %v417 = vld [vmem:[%s1 + $0x18c] sm:$0xf]
        %v418 = vld [vmem:[%s1 + $0x190] sm:$0xf]
        %v419 = vld [vmem:[%s1 + $0x194] sm:$0xf]
        %v420 = vld [vmem:[%s1 + $0x198] sm:$0xf]
        %v421 = vld [vmem:[%s1 + $0x19c] sm:$0xf]
        %v422 = vld [vmem:[%s1 + $0x1a0] sm:$0xf]
        %v423 = vld [vmem:[%s1 + $0x1a4] sm:$0xf]
        %v424 = vld [vmem:[%s1 + $0x1a8] sm:$0xf]
        %v425 = vld [vmem:[%s1 + $0x1ac] sm:$0xf]
        %v426 = vld [vmem:[%s1 + $0x1b0] sm:$0xf]
        %v427 = vld [vmem:[%s1 + $0x1b4] sm:$0xf]
        %v428 = vld [vmem:[%s1 + $0x1b8] sm:$0xf]
        %v429 = vld [vmem:[%s1 + $0x1bc] sm:$0xf]
        %v430 = vld [vmem:[%s1 + $0x1c0] sm:$0xf]
        %v431 = vld [vmem:[%s1 + $0x1c4] sm:$0xf]
        %v432 = vld [vmem:[%s1 + $0x1c8] sm:$0xf]
        %v433 = vld [vmem:[%s1 + $0x1cc] sm:$0xf]
        %v434 = vld [vmem:[%s1 + $0x1d0] sm:$0xf]
        %v435 = vld [vmem:[%s1 + $0x1d4] sm:$0xf]
        %v436 = vld [vmem:[%s1 + $0x1d8] sm:$0xf]
        %v437 = vld [vmem:[%s1 + $0x1dc] sm:$0xf]
        %v438 = vld [vmem:[%s1 + $0x1e0] sm:$0xf]
        %v439 = vld [vmem:[%s1 + $0x1e4] sm:$0xf]
        %v440 = vld [vmem:[%s1 + $0x1e8] sm:$0xf]
        %v441 = vld [vmem:[%s1 + $0x1ec] sm:$0xf]
        %v442 = vld [vmem:[%s1 + $0x1f0] sm:$0xf]
        %v443 = vld [vmem:[%s1 + $0x1f4] sm:$0xf]
        %v444 = vld [vmem:[%s1 + $0x1f8] sm:$0xf]
        %v445 = vld [vmem:[%s1 + $0x1fc] sm:$0xf]
        %v446 = vld [vmem:[%s1 + $0x200] sm:$0xf]
        %v447 = vld [vmem:[%s1 + $0x204] sm:$0xf]
        %v448 = vld [vmem:[%s1 + $0x208] sm:$0xf]
        %v449 = vld [vmem:[%s1 + $0x20c] sm:$0xf]
        %v450 = vld [vmem:[%s1 + $0x210] sm:$0xf]
        %v451 = vld [vmem:[%s1 + $0x214] sm:$0xf]
        %v452 = vld [vmem:[%s1 + $0x218] sm:$0xf]
        %v453 = vld [vmem:[%s1 + $0x21c] sm:$0xf]
        %v454 = vld [vmem:[%s1 + $0x220] sm:$0xf]
        %v455 = vld [vmem:[%s1 + $0x224] sm:$0xf]
        %v456 = vld [vmem:[%s1 + $0x228] sm:$0xf]
        %v457 = vld [vmem:[%s1 + $0x22c] sm:$0xf]
        %v458 = vld [vmem:[%s1 + $0x230] sm:$0xf]
        %v459 = vld [vmem:[%s1 + $0x234] sm:$0xf]
        %v460 = vld [vmem:[%s1 + $0x238] sm:$0xf]
        %v461 = vld [vmem:[%s1 + $0x23c] sm:$0xf]
        %v462 = vld [vmem:[%s2] sm:$0x1]
        %v464 = vlaneseq
        %v465 = vshrl.u32 %v464, 7
        %v466 = vsub.s32 0, %v465
        %v467 = vrot.slane %v462, %v466
        %v469 = vpack.c.b16 %v234, %v232
        %v470 = vpack.c.b16 %v312, %v306
        %v471 = vpack.c.b16 %v313, %v307
        %v472 = vpack.c.b16 %v258, %v256
        %v473 = vpack.c.b16 %v314, %v308
        %v474 = vpack.c.b16 %v315, %v309
        %v475 = vpack.c.b16 %v282, %v280
        %v476 = vpack.c.b16 %v316, %v310
        %v477 = vpack.c.b16 %v317, %v311
        %v631 = vunpack.c.l.b16 %v318
        %v632 = vunpack.c.l.b16 %v319
        %v633 = vunpack.c.l.b16 %v320
        %v634 = vunpack.c.l.b16 %v321
        %v635 = vunpack.c.l.b16 %v322
        %v636 = vunpack.c.l.b16 %v323
        %v637 = vunpack.c.l.b16 %v324
        %v638 = vunpack.c.l.b16 %v325
        %v639 = vunpack.c.l.b16 %v326
        %v640 = vunpack.c.l.b16 %v327
        %v641 = vunpack.c.l.b16 %v328
        %v642 = vunpack.c.l.b16 %v329
        %v643 = vunpack.c.l.b16 %v330
        %v644 = vunpack.c.l.b16 %v331
        %v645 = vunpack.c.l.b16 %v332
        %v646 = vunpack.c.l.b16 %v333
        %v647 = vunpack.c.l.b16 %v334
        %v648 = vunpack.c.l.b16 %v335
        %v649 = vunpack.c.l.b16 %v336
        %v650 = vunpack.c.l.b16 %v337
        %v651 = vunpack.c.l.b16 %v338
        %v652 = vunpack.c.l.b16 %v339
        %v653 = vunpack.c.l.b16 %v340
        %v654 = vunpack.c.l.b16 %v341
        %v655 = vunpack.c.l.b16 %v342
        %v656 = vunpack.c.l.b16 %v343
        %v657 = vunpack.c.l.b16 %v344
        %v658 = vunpack.c.l.b16 %v345
        %v659 = vunpack.c.l.b16 %v346
        %v660 = vunpack.c.l.b16 %v347
        %v661 = vunpack.c.l.b16 %v348
        %v662 = vunpack.c.l.b16 %v349
        %v663 = vunpack.c.l.b16 %v350
        %v664 = vunpack.c.l.b16 %v351
        %v665 = vunpack.c.l.b16 %v352
        %v666 = vunpack.c.l.b16 %v353
        %v667 = vunpack.c.l.b16 %v354
        %v668 = vunpack.c.l.b16 %v355
        %v669 = vunpack.c.l.b16 %v356
        %v670 = vunpack.c.l.b16 %v357
        %v671 = vunpack.c.l.b16 %v358
        %v672 = vunpack.c.l.b16 %v359
        %v673 = vunpack.c.l.b16 %v360
        %v674 = vunpack.c.l.b16 %v361
        %v675 = vunpack.c.l.b16 %v362
        %v676 = vunpack.c.l.b16 %v363
        %v677 = vunpack.c.l.b16 %v364
        %v678 = vunpack.c.l.b16 %v365
        %v679 = vunpack.c.l.b16 %v366
        %v680 = vunpack.c.l.b16 %v367
        %v681 = vunpack.c.l.b16 %v368
        %v682 = vunpack.c.l.b16 %v369
        %v683 = vunpack.c.l.b16 %v370
        %v684 = vunpack.c.l.b16 %v371
        %v685 = vunpack.c.l.b16 %v372
        %v686 = vunpack.c.l.b16 %v373
        %v687 = vunpack.c.l.b16 %v374
        %v688 = vunpack.c.l.b16 %v375
        %v689 = vunpack.c.l.b16 %v376
        %v690 = vunpack.c.l.b16 %v377
        %v691 = vunpack.c.l.b16 %v378
        %v692 = vunpack.c.l.b16 %v379
        %v693 = vunpack.c.l.b16 %v380
        %v694 = vunpack.c.l.b16 %v381
        %v695 = vunpack.c.l.b16 %v382
        %v696 = vunpack.c.l.b16 %v383
        %v697 = vunpack.c.l.b16 %v384
        %v698 = vunpack.c.l.b16 %v385
        %v699 = vunpack.c.l.b16 %v386
        %v700 = vunpack.c.l.b16 %v387
        %v701 = vunpack.c.l.b16 %v388
        %v702 = vunpack.c.l.b16 %v389
        %v703 = vunpack.c.l.b16 %v390
        %v704 = vunpack.c.l.b16 %v391
        %v705 = vunpack.c.l.b16 %v392
        %v706 = vunpack.c.l.b16 %v393
        %v707 = vunpack.c.l.b16 %v394
        %v708 = vunpack.c.l.b16 %v395
        %v709 = vunpack.c.l.b16 %v396
        %v710 = vunpack.c.l.b16 %v397
        %v711 = vunpack.c.l.b16 %v398
        %v712 = vunpack.c.l.b16 %v399
        %v713 = vunpack.c.l.b16 %v400
        %v714 = vunpack.c.l.b16 %v401
        %v715 = vunpack.c.l.b16 %v402
        %v716 = vunpack.c.l.b16 %v403
        %v717 = vunpack.c.l.b16 %v404
        %v718 = vunpack.c.l.b16 %v405
        %v719 = vunpack.c.l.b16 %v406
        %v720 = vunpack.c.l.b16 %v407
        %v721 = vunpack.c.l.b16 %v408
        %v722 = vunpack.c.l.b16 %v409
        %v723 = vunpack.c.l.b16 %v410
        %v724 = vunpack.c.l.b16 %v411
        %v725 = vunpack.c.l.b16 %v412
        %v726 = vunpack.c.l.b16 %v413
        %v727 = vunpack.c.l.b16 %v414
        %v728 = vunpack.c.l.b16 %v415
        %v729 = vunpack.c.l.b16 %v416
        %v730 = vunpack.c.l.b16 %v417
        %v731 = vunpack.c.l.b16 %v418
        %v732 = vunpack.c.l.b16 %v419
        %v733 = vunpack.c.l.b16 %v420
        %v734 = vunpack.c.l.b16 %v421
        %v735 = vunpack.c.l.b16 %v422
        %v736 = vunpack.c.l.b16 %v423
        %v737 = vunpack.c.l.b16 %v424
        %v738 = vunpack.c.l.b16 %v425
        %v739 = vunpack.c.l.b16 %v426
        %v740 = vunpack.c.l.b16 %v427
        %v741 = vunpack.c.l.b16 %v428
        %v742 = vunpack.c.l.b16 %v429
        %v743 = vunpack.c.l.b16 %v430
        %v744 = vunpack.c.l.b16 %v431
        %v745 = vunpack.c.l.b16 %v432
        %v746 = vunpack.c.l.b16 %v433
        %v747 = vunpack.c.l.b16 %v434
        %v748 = vunpack.c.l.b16 %v435
        %v749 = vunpack.c.l.b16 %v436
        %v750 = vunpack.c.l.b16 %v437
        %v751 = vunpack.c.l.b16 %v438
        %v752 = vunpack.c.l.b16 %v439
        %v753 = vunpack.c.l.b16 %v440
        %v754 = vunpack.c.l.b16 %v441
        %v755 = vunpack.c.l.b16 %v442
        %v756 = vunpack.c.l.b16 %v443
        %v757 = vunpack.c.l.b16 %v444
        %v758 = vunpack.c.l.b16 %v445
        %v759 = vunpack.c.l.b16 %v446
        %v760 = vunpack.c.l.b16 %v447
        %v761 = vunpack.c.l.b16 %v448
        %v762 = vunpack.c.l.b16 %v449
        %v763 = vunpack.c.l.b16 %v450
        %v764 = vunpack.c.l.b16 %v451
        %v765 = vunpack.c.l.b16 %v452
        %v766 = vunpack.c.l.b16 %v453
        %v767 = vunpack.c.l.b16 %v454
        %v768 = vunpack.c.l.b16 %v455
        %v769 = vunpack.c.l.b16 %v456
        %v770 = vunpack.c.l.b16 %v457
        %v771 = vunpack.c.l.b16 %v458
        %v772 = vunpack.c.l.b16 %v459
        %v773 = vunpack.c.l.b16 %v460
        %v774 = vunpack.c.l.b16 %v461
        %v775 = vpack.c.b16 %v632, %v631
        %v776 = vpack.c.b16 %v634, %v633
        %v777 = vpack.c.b16 %v636, %v635
        %v778 = vpack.c.b16 %v638, %v637
        %v779 = vpack.c.b16 %v640, %v639
        %v780 = vpack.c.b16 %v642, %v641
        %v781 = vpack.c.b16 %v644, %v643
        %v782 = vpack.c.b16 %v646, %v645
        %v783 = vpack.c.b16 %v648, %v647
        %v784 = vpack.c.b16 %v650, %v649
        %v785 = vpack.c.b16 %v652, %v651
        %v786 = vpack.c.b16 %v654, %v653
        %v787 = vpack.c.b16 %v656, %v655
        %v788 = vpack.c.b16 %v658, %v657
        %v789 = vpack.c.b16 %v660, %v659
        %v790 = vpack.c.b16 %v662, %v661
        %v791 = vpack.c.b16 %v664, %v663
        %v792 = vpack.c.b16 %v666, %v665
        %v793 = vpack.c.b16 %v668, %v667
        %v794 = vpack.c.b16 %v670, %v669
        %v795 = vpack.c.b16 %v672, %v671
        %v796 = vpack.c.b16 %v674, %v673
        %v797 = vpack.c.b16 %v676, %v675
        %v798 = vpack.c.b16 %v678, %v677
        %v799 = vpack.c.b16 %v680, %v679
        %v800 = vpack.c.b16 %v682, %v681
        %v801 = vpack.c.b16 %v684, %v683
        %v802 = vpack.c.b16 %v686, %v685
        %v803 = vpack.c.b16 %v688, %v687
        %v804 = vpack.c.b16 %v690, %v689
        %v805 = vpack.c.b16 %v692, %v691
        %v806 = vpack.c.b16 %v694, %v693
        %v807 = vpack.c.b16 %v696, %v695
        %v808 = vpack.c.b16 %v698, %v697
        %v809 = vpack.c.b16 %v700, %v699
        %v810 = vpack.c.b16 %v702, %v701
        %v811 = vpack.c.b16 %v704, %v703
        %v812 = vpack.c.b16 %v706, %v705
        %v813 = vpack.c.b16 %v708, %v707
        %v814 = vpack.c.b16 %v710, %v709
        %v815 = vpack.c.b16 %v712, %v711
        %v816 = vpack.c.b16 %v714, %v713
        %v817 = vpack.c.b16 %v716, %v715
        %v818 = vpack.c.b16 %v718, %v717
        %v819 = vpack.c.b16 %v720, %v719
        %v820 = vpack.c.b16 %v722, %v721
        %v821 = vpack.c.b16 %v724, %v723
        %v822 = vpack.c.b16 %v726, %v725
        %v823 = vpack.c.b16 %v728, %v727
        %v824 = vpack.c.b16 %v730, %v729
        %v825 = vpack.c.b16 %v732, %v731
        %v826 = vpack.c.b16 %v734, %v733
        %v827 = vpack.c.b16 %v736, %v735
        %v828 = vpack.c.b16 %v738, %v737
        %v829 = vpack.c.b16 %v740, %v739
        %v830 = vpack.c.b16 %v742, %v741
        %v831 = vpack.c.b16 %v744, %v743
        %v832 = vpack.c.b16 %v746, %v745
        %v833 = vpack.c.b16 %v748, %v747
        %v834 = vpack.c.b16 %v750, %v749
        %v835 = vpack.c.b16 %v752, %v751
        %v836 = vpack.c.b16 %v754, %v753
        %v837 = vpack.c.b16 %v756, %v755
        %v838 = vpack.c.b16 %v758, %v757
        %v839 = vpack.c.b16 %v760, %v759
        %v840 = vpack.c.b16 %v762, %v761
        %v841 = vpack.c.b16 %v764, %v763
        %v842 = vpack.c.b16 %v766, %v765
        %v843 = vpack.c.b16 %v768, %v767
        %v844 = vpack.c.b16 %v770, %v769
        %v845 = vpack.c.b16 %v772, %v771
        %v846 = vpack.c.b16 %v774, %v773
        %919 = vmatprep.subr.bf16.mxu0 0
        %920 = vmatpush1.bf16.msra.mxu0 %v775
        %921 = vmatprep.subr.bf16.mxu0 0
        %922 = vmatpush1.bf16.msra.mxu0 %v776
        %923 = vmatprep.subr.bf16.mxu0 0
        %924 = vmatpush1.bf16.msra.mxu0 %v777
        %925 = vmatprep.subr.bf16.mxu0 0
        %926 = vmatpush1.bf16.msra.mxu0 %v778
        %927 = vmatprep.subr.bf16.mxu0 0
        %928 = vmatpush1.bf16.msra.mxu0 %v779
        %929 = vmatprep.subr.bf16.mxu0 0
        %930 = vmatpush1.bf16.msra.mxu0 %v780
        %931 = vmatprep.subr.bf16.mxu0 0
        %932 = vmatpush1.bf16.msra.mxu0 %v781
        %933 = vmatprep.subr.bf16.mxu0 0
        %934 = vmatpush1.bf16.msra.mxu0 %v782
        %935 = vmatprep.subr.bf16.mxu0 0
        %936 = vmatpush1.bf16.msra.mxu0 %v783
        %937 = vmatprep.subr.bf16.mxu0 0
        %938 = vmatpush1.bf16.msra.mxu0 %v784
        %939 = vmatprep.subr.bf16.mxu0 0
        %940 = vmatpush1.bf16.msra.mxu0 %v785
        %941 = vmatprep.subr.bf16.mxu0 0
        %942 = vmatpush1.bf16.msra.mxu0 %v786
        %943 = vmatprep.subr.bf16.mxu0 0
        %944 = vmatpush1.bf16.msra.mxu0 %v787
        %945 = vmatprep.subr.bf16.mxu0 0
        %946 = vmatpush1.bf16.msra.mxu0 %v788
        %947 = vmatprep.subr.bf16.mxu0 0
        %948 = vmatpush1.bf16.msra.mxu0 %v789
        %949 = vmatprep.subr.bf16.mxu0 0
        %950 = vmatpush1.bf16.msra.mxu0 %v790
        %951 = vmatprep.mubr.bf16.mxu0 %v470
        %952 = vmatmul.mubr.bf16.gmra.mrb[0].mxu0 %v469
        %v953 = vpop.f32.mrb[0].mxu0
        %v954 = vadd.f32 %v467, %v953
        %v955 = vpop.f32.mrb[0].mxu0
        %v956 = vpop.f32.mrb[0].mxu0
        %v957 = vadd.f32 %v467, %v956
        %v958 = vpop.f32.mrb[0].mxu0
        %959 = vdwg.mxu0
        %960 = vmatprep.subr.bf16.mxu0 0
        %961 = vmatpush1.bf16.msra.mxu0 %v791
        %962 = vmatprep.subr.bf16.mxu0 0
        %963 = vmatpush1.bf16.msra.mxu0 %v792
        %964 = vmatprep.subr.bf16.mxu0 0
        %965 = vmatpush1.bf16.msra.mxu0 %v793
        %966 = vmatprep.subr.bf16.mxu0 0
        %967 = vmatpush1.bf16.msra.mxu0 %v794
        %968 = vmatprep.subr.bf16.mxu0 0
        %969 = vmatpush1.bf16.msra.mxu0 %v795
        %970 = vmatprep.subr.bf16.mxu0 0
        %971 = vmatpush1.bf16.msra.mxu0 %v796
        %972 = vmatprep.subr.bf16.mxu0 0
        %973 = vmatpush1.bf16.msra.mxu0 %v797
        %974 = vmatprep.subr.bf16.mxu0 0
        %975 = vmatpush1.bf16.msra.mxu0 %v798
        %976 = vmatprep.subr.bf16.mxu0 0
        %977 = vmatpush1.bf16.msra.mxu0 %v799
        %978 = vmatprep.subr.bf16.mxu0 0
        %979 = vmatpush1.bf16.msra.mxu0 %v800
        %980 = vmatprep.subr.bf16.mxu0 0
        %981 = vmatpush1.bf16.msra.mxu0 %v801
        %982 = vmatprep.subr.bf16.mxu0 0
        %983 = vmatpush1.bf16.msra.mxu0 %v802
        %984 = vmatprep.subr.bf16.mxu0 0
        %985 = vmatpush1.bf16.msra.mxu0 %v803
        %986 = vmatprep.subr.bf16.mxu0 0
        %987 = vmatpush1.bf16.msra.mxu0 %v804
        %988 = vmatprep.subr.bf16.mxu0 0
        %989 = vmatpush1.bf16.msra.mxu0 %v805
        %990 = vmatprep.subr.bf16.mxu0 0
        %991 = vmatpush1.bf16.msra.mxu0 %v806
        %992 = vmatprep.mubr.bf16.mxu0 %v472
        %993 = vmatmul.mubr.bf16.gmra.mrb[0].mxu0 %v471
        %v994 = vpop.f32.mrb[0].mxu0
        %v995 = vadd.f32 %v954, %v994
        %v996 = vpop.f32.mrb[0].mxu0
        %v997 = vpop.f32.mrb[0].mxu0
        %v998 = vadd.f32 %v957, %v997
        %v999 = vpop.f32.mrb[0].mxu0
        %1000 = vdwg.mxu0
        %1001 = vmatprep.subr.bf16.mxu0 0
        %1002 = vmatpush1.bf16.msra.mxu0 %v807
        %1003 = vmatprep.subr.bf16.mxu0 0
        %1004 = vmatpush1.bf16.msra.mxu0 %v808
        %1005 = vmatprep.subr.bf16.mxu0 0
        %1006 = vmatpush1.bf16.msra.mxu0 %v809
        %1007 = vmatprep.subr.bf16.mxu0 0
        %1008 = vmatpush1.bf16.msra.mxu0 %v810
        %1009 = vmatprep.subr.bf16.mxu0 0
        %1010 = vmatpush1.bf16.msra.mxu0 %v811
        %1011 = vmatprep.subr.bf16.mxu0 0
        %1012 = vmatpush1.bf16.msra.mxu0 %v812
        %1013 = vmatprep.subr.bf16.mxu0 0
        %1014 = vmatpush1.bf16.msra.mxu0 %v813
        %1015 = vmatprep.subr.bf16.mxu0 0
        %1016 = vmatpush1.bf16.msra.mxu0 %v814
        %1017 = vmatprep.subr.bf16.mxu0 0
        %1018 = vmatpush1.bf16.msra.mxu0 %v815
        %1019 = vmatprep.subr.bf16.mxu0 0
        %1020 = vmatpush1.bf16.msra.mxu0 %v816
        %1021 = vmatprep.subr.bf16.mxu0 0
        %1022 = vmatpush1.bf16.msra.mxu0 %v817
        %1023 = vmatprep.subr.bf16.mxu0 0
        %1024 = vmatpush1.bf16.msra.mxu0 %v818
        %1025 = vmatprep.subr.bf16.mxu0 0
        %1026 = vmatpush1.bf16.msra.mxu0 %v819
        %1027 = vmatprep.subr.bf16.mxu0 0
        %1028 = vmatpush1.bf16.msra.mxu0 %v820
        %1029 = vmatprep.subr.bf16.mxu0 0
        %1030 = vmatpush1.bf16.msra.mxu0 %v821
        %1031 = vmatprep.subr.bf16.mxu0 0
        %1032 = vmatpush1.bf16.msra.mxu0 %v822
        %1033 = vmatprep.mubr.bf16.mxu0 %v474
        %1034 = vmatmul.mubr.bf16.gmra.mrb[0].mxu0 %v473
        %v1035 = vpop.f32.mrb[0].mxu0
        %v1036 = vadd.f32 %v995, %v1035
        %v1037 = vpop.f32.mrb[0].mxu0
        %v1038 = vpop.f32.mrb[0].mxu0
        %v1039 = vadd.f32 %v998, %v1038
        %v1040 = vpop.f32.mrb[0].mxu0
        %1041 = vdwg.mxu0
        %1042 = vmatprep.subr.bf16.mxu0 0
        %1043 = vmatpush1.bf16.msra.mxu0 %v823
        %1044 = vmatprep.subr.bf16.mxu0 0
        %1045 = vmatpush1.bf16.msra.mxu0 %v824
        %1046 = vmatprep.subr.bf16.mxu0 0
        %1047 = vmatpush1.bf16.msra.mxu0 %v825
        %1048 = vmatprep.subr.bf16.mxu0 0
        %1049 = vmatpush1.bf16.msra.mxu0 %v826
        %1050 = vmatprep.subr.bf16.mxu0 0
        %1051 = vmatpush1.bf16.msra.mxu0 %v827
        %1052 = vmatprep.subr.bf16.mxu0 0
        %1053 = vmatpush1.bf16.msra.mxu0 %v828
        %1054 = vmatprep.subr.bf16.mxu0 0
        %1055 = vmatpush1.bf16.msra.mxu0 %v829
        %1056 = vmatprep.subr.bf16.mxu0 0
        %1057 = vmatpush1.bf16.msra.mxu0 %v830
        %1058 = vmatprep.subr.bf16.mxu0 0
        %1059 = vmatpush1.bf16.msra.mxu0 %v831
        %1060 = vmatprep.subr.bf16.mxu0 0
        %1061 = vmatpush1.bf16.msra.mxu0 %v832
        %1062 = vmatprep.subr.bf16.mxu0 0
        %1063 = vmatpush1.bf16.msra.mxu0 %v833
        %1064 = vmatprep.subr.bf16.mxu0 0
        %1065 = vmatpush1.bf16.msra.mxu0 %v834
        %1066 = vmatprep.subr.bf16.mxu0 0
        %1067 = vmatpush1.bf16.msra.mxu0 %v835
        %1068 = vmatprep.subr.bf16.mxu0 0
        %1069 = vmatpush1.bf16.msra.mxu0 %v836
        %1070 = vmatprep.subr.bf16.mxu0 0
        %1071 = vmatpush1.bf16.msra.mxu0 %v837
        %1072 = vmatprep.subr.bf16.mxu0 0
        %1073 = vmatpush1.bf16.msra.mxu0 %v838
        %1074 = vmatprep.mubr.bf16.mxu0 %v476
        %1075 = vmatmul.mubr.bf16.gmra.mrb[0].mxu0 %v475
        %v1076 = vpop.f32.mrb[0].mxu0
        %v1077 = vadd.f32 %v1036, %v1076
        %v1078 = vpop.f32.mrb[0].mxu0
        %v1079 = vpop.f32.mrb[0].mxu0
        %v1080 = vadd.f32 %v1039, %v1079
        %v1081 = vpop.f32.mrb[0].mxu0
        %1082 = vdwg.mxu0
        %1083 = vmatprep.subr.bf16.mxu0 0
        %1084 = vmatpush1.bf16.msra.mxu0 %v839
        %1085 = vmatprep.subr.bf16.mxu0 0
        %1086 = vmatpush1.bf16.msra.mxu0 %v840
        %1087 = vmatprep.subr.bf16.mxu0 0
        %1088 = vmatpush1.bf16.msra.mxu0 %v841
        %1089 = vmatprep.subr.bf16.mxu0 0
        %1090 = vmatpush1.bf16.msra.mxu0 %v842
        %1091 = vmatprep.subr.bf16.mxu0 0
        %1092 = vmatpush1.bf16.msra.mxu0 %v843
        %1093 = vmatprep.subr.bf16.mxu0 0
        %1094 = vmatpush1.bf16.msra.mxu0 %v844
        %1095 = vmatprep.subr.bf16.mxu0 0
        %1096 = vmatpush1.bf16.msra.mxu0 %v845
        %1097 = vmatprep.subr.bf16.mxu0 0
        %1098 = vmatpush1.bf16.msra.mxu0 %v846
        %1099 = vmatprep.subr.bf16.mxu0 0
        %1100 = vmatpush1.bf16.msra.mxu0 0
        %1101 = vmatprep.subr.bf16.mxu0 0
        %1102 = vmatpush1.bf16.msra.mxu0 0
        %1103 = vmatprep.subr.bf16.mxu0 0
        %1104 = vmatpush1.bf16.msra.mxu0 0
        %1105 = vmatprep.subr.bf16.mxu0 0
        %1106 = vmatpush1.bf16.msra.mxu0 0
        %1107 = vmatprep.subr.bf16.mxu0 0
        %1108 = vmatpush1.bf16.msra.mxu0 0
        %1109 = vmatprep.subr.bf16.mxu0 0
        %1110 = vmatpush1.bf16.msra.mxu0 0
        %1111 = vmatprep.subr.bf16.mxu0 0
        %1112 = vmatpush1.bf16.msra.mxu0 0
        %1113 = vmatprep.subr.bf16.mxu0 0
        %1114 = vmatpush1.bf16.msra.mxu0 0
        %1115 = vmatprep.mubr.bf16.mxu0 0
        %1116 = vmatmul.mubr.bf16.gmra.mrb[0].mxu0 %v477
        %v1117 = vpop.f32.mrb[0].mxu0
        %v1118 = vadd.f32 %v1077, %v1117
        %v1119 = vpop.f32.mrb[0].mxu0
        %v1120 = vpop.f32.mrb[0].mxu0
        %v1121 = vadd.f32 %v1080, %v1120
        %v1122 = vpop.f32.mrb[0].mxu0
        %1123 = vdwg.mxu0
        %v1124 = vmax.f32 %v1118, 0.0
        %v1125 = vmax.f32 %v1121, 0.0
        %v1126 = vpack.c.bf16 %v1124, %v1124
        %v1127 = vpack.c.bf16 %v1125, %v1125
        %1128 = vst [vmem:[%s180] sm:$0xf] %v1126
        %1129 = vst [vmem:[%s180 + $0x4] sm:$0xf] %v1127
        %s1130 = sand.u32 %s107, 1
        %s1131 = scalar_lea.sflag [#allocation3], %s1130
        %s1132 = sand.u32 %s107, 1
        %s1133 = smul.addr %s1132, 8
        %s1134 = scalar_lea.vmem [#allocation2], %s1133
        // Predicated region
        $region33: #{tpu_custom_call.1} parent=31 // pred_check
          %p1135 = pneg %p117
        $region34: #{tpu_custom_call.1} parent=31 // pred_check_branch
          %1137 = sbr.rel (%p1135) target = $region36
        $region35: #{tpu_custom_call.1} parent=31 // pred_region
          %s1138 = smul.u32 2, %s22
          %s1140 = ssub.s32 128, 128
          %1141 = vsyncadd %s1131, %s1140
          %s1142 = smul.addr %s21, 8
          %s1143 = sadd.s32 %s1138, %s1142
          %s1144 = smul.addr %s1143, 64
          %s1145 = scalar_lea.hbm %s3, %s1144
          %s1146 = sshll.u32 %s1134, 4
          %s1147 = int_to_ptr.vmem [resolvable:$true] %s1146
          %1152 = dma.vmem_to_hbm [thread:$0]  %s1147, 128, %s1145, %s1131, 64, 64, 4
        $region36: #{tpu_custom_call.1} parent=31 // pred_fallthru
          _
      $region32: #{tpu_custom_call.1} parent=5 // pred_fallthru
        _
      %p1153 = scmp.le.s32.totalorder 2, %s12
      // Predicated region
      $region37: #{tpu_custom_call.1} parent=5 // pred_check
        %p1154 = pneg %p1153
      $region38: #{tpu_custom_call.1} parent=5 // pred_check_branch
        %1156 = sbr.rel (%p1154) target = $region40
      $region39: #{tpu_custom_call.1} parent=5 // pred_region
        %s1157 = ssub.s32 %s12, 2
        // Predicated region
        $region41: #{tpu_custom_call.1} parent=39 // pred_check
          %p1158 = pneg %p123
        $region42: #{tpu_custom_call.1} parent=39 // pred_check_branch
          %1160 = sbr.rel (%p1158) target = $region44
        $region43: #{tpu_custom_call.1} parent=39 // pred_region
          %s1161 = sand.u32 %s108, 1
          %s1162 = scalar_lea.sflag [#allocation3], %s1161
          %s1163 = sand.u32 %s108, 1
          %s1164 = smul.addr %s1163, 8
          %s1165 = scalar_lea.vmem [#allocation2], %s1164
          %1166 = dma.done %s1162, 128
        $region44: #{tpu_custom_call.1} parent=39 // pred_fallthru
          _
      $region40: #{tpu_custom_call.1} parent=5 // pred_fallthru
        _
    $region6: #{tpu_custom_call.1} parent=1 // loop_footer
      %s16 = sadd.s32 1, %s12
    $region7: #{tpu_custom_call.1} parent=1 // loop_footer_branch
      %11 = sbr.rel target = $region3
    $region8: #{tpu_custom_call.1} parent=1 // loop_exit
      _
    %1167 = vsyncpa [#allocation3], 1
    %s1168 = scalar_lea.sflag [#allocation3], 1
    %1169 = vsyncpa %s1168, 1

</llo_original>
